<compile_context>
chip_gen: v7x
topology: tpu7x:2x2x1
jax: 0.10.0
libtpu: 0.0.40
codegen_flags: <defaults>
</compile_context>

<pallas_src>
import functools

import jax
import jax.numpy as jnp
from jax.experimental import pallas as pl
from jax.experimental.pallas import tpu as pltpu


def _round_up(n, m):
    return -(-n // m) * m


def _pad2d(a, rows, cols):
    return jnp.pad(a, ((0, rows - a.shape[0]), (0, cols - a.shape[1])))


def sen_att_kernel(x_ref, wqkv_ref, wfc_ref, bfc_ref, gamma_ref, beta_ref,
                   o_ref, *, seq, dk_pad, d_in):
    rows, d_pad = x_ref.shape          # (block_b * S, 128k) lane-dense slab
    bt = rows // seq
    cd = wqkv_ref.dtype                # MXU operand (compute) dtype

    x = x_ref[...]                     # (rows, D_pad)
    x_f32 = x.astype(jnp.float32)

    # ---- fused Q/K/V projection: one (rows, D_pad) @ (D_pad, 3*Dk_pad) dot ----
    qkv = jnp.dot(x.astype(cd), wqkv_ref[...],
                  preferred_element_type=jnp.float32)        # (rows, 3*Dk_pad) f32

    # 128-aligned, 128-wide column bands -> free views; 3-D view only for the
    # batched attention dots (last dim is a lane multiple, reshape is cheap).
    q = qkv[:, 0 * dk_pad:1 * dk_pad].reshape(bt, seq, dk_pad)
    k = qkv[:, 1 * dk_pad:2 * dk_pad].reshape(bt, seq, dk_pad)
    v = qkv[:, 2 * dk_pad:3 * dk_pad].reshape(bt, seq, dk_pad)

    # ---- attention scores: contract last dims directly (no explicit k.T) ----
    scores = jax.lax.dot_general(
        q.astype(cd), k.astype(cd),
        (((2,), (2,)), ((0,), (0,))),
        preferred_element_type=jnp.float32)                  # (bt, S, S) f32

    # softmax (max-subtracted); normalize after the att@v matmul
    m = jnp.max(scores, axis=-1, keepdims=True)
    p = jnp.exp(scores - m)
    p_c = p.astype(cd)                 # same quantized p for numerator & denominator
    denom = jnp.sum(p_c.astype(jnp.float32), axis=-1, keepdims=True)
    inv_denom = pl.reciprocal(denom, approx=True)            # EUP slot, ~free

    a = jax.lax.dot_general(
        p_c, v.astype(cd),
        (((2,), (1,)), ((0,), (0,))),
        preferred_element_type=jnp.float32)                  # (bt, S, Dk_pad) f32
    a = (a * inv_denom).reshape(rows, dk_pad)

    # ---- fc -> relu -> residual -> LayerNorm (VPU math stays f32) ----
    h = jnp.dot(a.astype(cd), wfc_ref[...],
                preferred_element_type=jnp.float32)          # (rows, D_pad) f32
    h = jnp.maximum(h + bfc_ref[...].astype(jnp.float32), 0.0)
    y = x_f32 + h                      # padded lanes stay exactly 0

    # LayerNorm over the *real* D_in features. Padded lanes of y are 0, so
    # full-lane sums equal real-feature sums; variance via E[y^2] - mu^2.
    inv_d = jnp.float32(1.0 / d_in)
    mu = jnp.sum(y, axis=-1, keepdims=True) * inv_d
    ms = jnp.sum(y * y, axis=-1, keepdims=True) * inv_d
    var = jnp.maximum(ms - mu * mu, 0.0)
    inv = jax.lax.rsqrt(var + 1e-5)
    out = (y - mu) * inv * gamma_ref[...].astype(jnp.float32) \
          + beta_ref[...].astype(jnp.float32)

    o_ref[...] = out.astype(o_ref.dtype)   # lane-dense, unmasked store


def sen_att(x, wq, wk, wv, wfc, bfc, gamma, beta, *,
            block_b=None, compute_dtype=jnp.bfloat16):
    """x: (B, S, D_in).  wq/wk/wv: (D_in, D_k) (pre-transposed nn.Linear weights),
    wfc: (D_k, D_in), bfc/gamma/beta: (1, D_in) or (D_in,).
    Returns (B, S, D_in) in x.dtype.

    compute_dtype is the MXU operand dtype (bf16 by default; native on v5e/v6e/v7x).
    Accumulation and all softmax / LayerNorm / elementwise math stay float32."""
    B, S, D_in = x.shape
    D_k = wq.shape[1]
    LANE = 128
    d_pad = _round_up(D_in, LANE)
    dk_pad = _round_up(D_k, LANE)

    # ---- lane-dense, 128-aligned operands (all padding is zeros -> exact) ----
    w_qkv = jnp.concatenate(
        [_pad2d(wq, d_pad, dk_pad),
         _pad2d(wk, d_pad, dk_pad),
         _pad2d(wv, d_pad, dk_pad)], axis=1).astype(compute_dtype)  # (d_pad, 3*dk_pad)
    wfc_p = _pad2d(wfc, dk_pad, d_pad).astype(compute_dtype)
    bfc_p = _pad2d(jnp.reshape(bfc, (1, -1)), 1, d_pad).astype(jnp.float32)
    gamma_p = _pad2d(jnp.reshape(gamma, (1, -1)), 1, d_pad).astype(jnp.float32)
    beta_p = _pad2d(jnp.reshape(beta, (1, -1)), 1, d_pad).astype(jnp.float32)

    # Wrapper-side flatten + pad: the kernel sees a 2-D (B*S, d_pad) slab.
    x2 = jnp.pad(x.reshape(B * S, D_in), ((0, 0), (0, d_pad - D_in)))

    # ---- grid: ~512-row slabs, but keep >=2 steps when B >= 2 (v7x megacore) ----
    if block_b is None:
        block_b = max(1, min(B, pl.cdiv(512, S)))
        if B >= 2:
            block_b = min(block_b, max(1, B // 2))
    block_b = max(1, min(block_b, B))
    while B % block_b:                 # exact blocks only (no partial batches)
        block_b -= 1
    if (block_b * S) % 8:              # keep the row tile (8,128)-friendly
        block_b = B                    # full-extent block is always legal
    rows = block_b * S
    grid = (B // block_b,)

    kernel = functools.partial(sen_att_kernel, seq=S, dk_pad=dk_pad, d_in=D_in)

    # ---- advisory cost + VMEM sizing ----
    flops = int(2 * B * S * (d_pad * 3 * dk_pad + 2 * S * dk_pad + dk_pad * d_pad))
    transcendentals = int(B * S * S + 2 * B * S)             # exp, rsqrt, recip
    bytes_accessed = int(
        2 * B * S * d_pad * jnp.dtype(x.dtype).itemsize      # x in + out
        + (w_qkv.size + wfc_p.size) * jnp.dtype(compute_dtype).itemsize
        + (bfc_p.size + gamma_p.size + beta_p.size) * 4)

    f32b = 4
    cdb = jnp.dtype(compute_dtype).itemsize
    inb = jnp.dtype(x.dtype).itemsize
    est_vmem = (
        4 * rows * d_pad * inb                                # x + out, double-buffered
        + 2 * (d_pad * 3 * dk_pad + dk_pad * d_pad) * cdb     # weights, double-buffered
        + 6 * d_pad * f32b                                    # bias / gamma / beta
        + rows * (3 * dk_pad + dk_pad + 3 * d_pad) * f32b     # qkv, a, h/y/out temps
        + 2 * block_b * S * S * f32b)                         # scores + p
    vmem_limit = int(min(max(2 * est_vmem, 32 * 2 ** 20), 64 * 2 ** 20))

    full = lambda shape: pl.BlockSpec(shape, lambda b: (0,) * len(shape))

    out_pad = pl.pallas_call(
        kernel,
        out_shape=jax.ShapeDtypeStruct((B * S, d_pad), x.dtype),
        grid_spec=pltpu.PrefetchScalarGridSpec(
            num_scalar_prefetch=0,
            grid=grid,
            in_specs=[
                pl.BlockSpec((rows, d_pad), lambda b: (b, 0)),   # x slab
                full((d_pad, 3 * dk_pad)),                       # Wq|Wk|Wv (padded)
                full((dk_pad, d_pad)),                           # Wfc (padded)
                full((1, d_pad)),                                # b_fc
                full((1, d_pad)),                                # gamma
                full((1, d_pad)),                                # beta
            ],
            out_specs=pl.BlockSpec((rows, d_pad), lambda b: (b, 0)),
        ),
        compiler_params=pltpu.CompilerParams(
            dimension_semantics=("parallel",),
            vmem_limit_bytes=vmem_limit),
        cost_estimate=pl.CostEstimate(
            flops=flops, transcendentals=transcendentals,
            bytes_accessed=bytes_accessed),
    )(x2, w_qkv, wfc_p, bfc_p, gamma_p, beta_p)

    # Slice off the zero lanes and restore the (B, S, D_in) view (wrapper-side
    # layout plumbing — padded output lanes are exactly zero by construction).
    return out_pad[:, :D_in].reshape(B, S, D_in)


def sen_att_ref(x, wq, wk, wv, wfc, bfc, gamma, beta):
    """Pure-JAX f32 reference for correctness check."""
    xf = x.astype(jnp.float32)
    q = xf @ wq
    k = xf @ wk
    v = xf @ wv
    scores = jnp.einsum("bqd,bkd->bqk", q, k)
    att = jax.nn.softmax(scores, axis=-1)
    a = jnp.einsum("bqk,bkd->bqd", att, v)
    h = jax.nn.relu(a @ wfc + bfc)
    y = xf + h
    mu = jnp.mean(y, axis=-1, keepdims=True)
    var = jnp.mean((y - mu) ** 2, axis=-1, keepdims=True)
    return ((y - mu) * jax.lax.rsqrt(var + 1e-5)) * gamma + beta


if __name__ == "__main__":
    hidden_size = 8
    D_in = hidden_size * 4      # 32
    D_k = hidden_size * 8       # 64
    B, S = 2, 8

    key = jax.random.PRNGKey(0)
    kx, kq, kk, kv, kf, kb = jax.random.split(key, 6)

    x = jax.random.normal(kx, (B, S, D_in), dtype=jnp.float32)
    # nn.Linear weights are (out, in); store pre-transposed as (in, out).
    wq = 0.1 * jax.random.normal(kq, (D_in, D_k), dtype=jnp.float32)
    wk = 0.1 * jax.random.normal(kk, (D_in, D_k), dtype=jnp.float32)
    wv = 0.1 * jax.random.normal(kv, (D_in, D_k), dtype=jnp.float32)
    wfc = 0.1 * jax.random.normal(kf, (D_k, D_in), dtype=jnp.float32)
    bfc = 0.01 * jax.random.normal(kb, (1, D_in), dtype=jnp.float32)
    gamma = jnp.ones((1, D_in), dtype=jnp.float32)   # LayerNorm default init
    beta = jnp.zeros((1, D_in), dtype=jnp.float32)

    ref = sen_att_ref(x, wq, wk, wv, wfc, bfc, gamma, beta)

    # f32 MXU operands: tight check (tolerance covers approx reciprocal only).
    out = jax.block_until_ready(
        sen_att(x, wq, wk, wv, wfc, bfc, gamma, beta,
                compute_dtype=jnp.float32))
    assert out.shape == (B, S, D_in)
    assert jnp.allclose(out, ref, atol=3e-3, rtol=3e-3), "f32 mismatch vs reference"

    # Default path: bf16 MXU operands (native on v5e/v6e/v7x), f32 accumulation.
    out_bf16 = jax.block_until_ready(
        sen_att(x, wq, wk, wv, wfc, bfc, gamma, beta))
    assert out_bf16.shape == (B, S, D_in)
    assert jnp.allclose(out_bf16, ref, atol=5e-2, rtol=5e-2), \
        "bf16 mismatch vs reference"

    print("KERNEL_OK")
</pallas_src>

<mosaic_0001>
module attributes {stable_mosaic.version = 11 : i64} {
  func.func @sen_att_kernel(%arg0: i32, %arg1: memref<8x128xf32, #tpu.memory_space<vmem>>, %arg2: memref<128x384xf32, #tpu.memory_space<vmem>>, %arg3: memref<128x128xf32, #tpu.memory_space<vmem>>, %arg4: memref<1x128xf32, #tpu.memory_space<vmem>>, %arg5: memref<1x128xf32, #tpu.memory_space<vmem>>, %arg6: memref<1x128xf32, #tpu.memory_space<vmem>>, %arg7: memref<8x128xf32, #tpu.memory_space<vmem>>) attributes {dimension_semantics = [#tpu.dimension_semantics<parallel>], iteration_bounds = array<i64: 2>, scalar_prefetch = 0 : i64, scratch_operands = 0 : i64, tpu.core_type = #tpu.core_type<tc>, window_params = [{transform_indices = @transform_0, window_bounds = array<i64: 8, 128>}, {pipeline_mode = #tpu.pipeline_mode<synchronous>, transform_indices = @transform_1, window_bounds = array<i64: 128, 384>}, {pipeline_mode = #tpu.pipeline_mode<synchronous>, transform_indices = @transform_2, window_bounds = array<i64: 128, 128>}, {pipeline_mode = #tpu.pipeline_mode<synchronous>, transform_indices = @transform_3, window_bounds = array<i64: 1, 128>}, {pipeline_mode = #tpu.pipeline_mode<synchronous>, transform_indices = @transform_4, window_bounds = array<i64: 1, 128>}, {pipeline_mode = #tpu.pipeline_mode<synchronous>, transform_indices = @transform_5, window_bounds = array<i64: 1, 128>}, {transform_indices = @transform_6, window_bounds = array<i64: 8, 128>}]} {
    %c0 = arith.constant 0 : index
    %c0_0 = arith.constant 0 : index
    %0 = vector.load %arg1[%c0, %c0_0] : memref<8x128xf32, #tpu.memory_space<vmem>>, vector<8x128xf32>
    %c0_1 = arith.constant 0 : index
    %c0_2 = arith.constant 0 : index
    %1 = vector.load %arg2[%c0_1, %c0_2] : memref<128x384xf32, #tpu.memory_space<vmem>>, vector<128x384xf32>
    %cst = arith.constant dense<0.000000e+00> : vector<8x384xf32>
    %2 = tpu.matmul %0, %1, %cst {dimension_numbers = #tpu.dot_dimension_numbers<[1], [0], [0], [1], [0, 0, 1, 1], [], []>} : vector<8x128xf32>, vector<128x384xf32>, vector<8x384xf32> -> vector<8x384xf32>
    %3 = vector.extract_strided_slice %2 {offsets = [0, 0], sizes = [8, 128], strides = [1, 1]} : vector<8x384xf32> to vector<8x128xf32>
    %4 = vector.shape_cast %3 : vector<8x128xf32> to vector<1x8x128xf32>
    %5 = vector.extract_strided_slice %2 {offsets = [0, 128], sizes = [8, 128], strides = [1, 1]} : vector<8x384xf32> to vector<8x128xf32>
    %6 = vector.shape_cast %5 : vector<8x128xf32> to vector<1x8x128xf32>
    %7 = vector.extract_strided_slice %2 {offsets = [0, 256], sizes = [8, 128], strides = [1, 1]} : vector<8x384xf32> to vector<8x128xf32>
    %8 = vector.shape_cast %7 : vector<8x128xf32> to vector<1x8x128xf32>
    %cst_3 = arith.constant dense<0.000000e+00> : vector<1x8x8xf32>
    %9 = tpu.matmul %4, %6, %cst_3 {dimension_numbers = #tpu.dot_dimension_numbers<[2], [2], [1], [1], [0, 0, 0, 1, 1, 1], [0], [0]>} : vector<1x8x128xf32>, vector<1x8x128xf32>, vector<1x8x8xf32> -> vector<1x8x8xf32>
    %cst_4 = arith.constant dense<0xFF800000> : vector<1x8xf32>
    %10 = vector.multi_reduction <maximumf>, %9, %cst_4 [2] : vector<1x8x8xf32> to vector<1x8xf32>
    %11 = vector.shape_cast %10 : vector<1x8xf32> to vector<1x8x1xf32>
    %12 = vector.broadcast %11 : vector<1x8x1xf32> to vector<1x8x8xf32>
    %13 = arith.subf %9, %12 : vector<1x8x8xf32>
    %14 = math.exp %13 : vector<1x8x8xf32>
    %cst_5 = arith.constant dense<0.000000e+00> : vector<1x8xf32>
    %15 = vector.multi_reduction <add>, %14, %cst_5 [2] : vector<1x8x8xf32> to vector<1x8xf32>
    %16 = vector.shape_cast %15 : vector<1x8xf32> to vector<1x8x1xf32>
    %17 = tpu.reciprocal %16 {approx = true} : vector<1x8x1xf32> -> vector<1x8x1xf32>
    %cst_6 = arith.constant dense<0.000000e+00> : vector<1x8x128xf32>
    %18 = tpu.matmul %14, %8, %cst_6 {dimension_numbers = #tpu.dot_dimension_numbers<[2], [1], [1], [2], [0, 0, 0, 1, 1, 2], [0], [0]>} : vector<1x8x8xf32>, vector<1x8x128xf32>, vector<1x8x128xf32> -> vector<1x8x128xf32>
    %19 = vector.broadcast %17 : vector<1x8x1xf32> to vector<1x8x128xf32>
    %20 = arith.mulf %18, %19 : vector<1x8x128xf32>
    %21 = vector.shape_cast %20 : vector<1x8x128xf32> to vector<8x128xf32>
    %c0_7 = arith.constant 0 : index
    %c0_8 = arith.constant 0 : index
    %22 = vector.load %arg3[%c0_7, %c0_8] : memref<128x128xf32, #tpu.memory_space<vmem>>, vector<128x128xf32>
    %cst_9 = arith.constant dense<0.000000e+00> : vector<8x128xf32>
    %23 = tpu.matmul %21, %22, %cst_9 {dimension_numbers = #tpu.dot_dimension_numbers<[1], [0], [0], [1], [0, 0, 1, 1], [], []>} : vector<8x128xf32>, vector<128x128xf32>, vector<8x128xf32> -> vector<8x128xf32>
    %c0_10 = arith.constant 0 : index
    %c0_11 = arith.constant 0 : index
    %24 = vector.load %arg4[%c0_10, %c0_11] : memref<1x128xf32, #tpu.memory_space<vmem>>, vector<1x128xf32>
    %25 = vector.broadcast %24 : vector<1x128xf32> to vector<8x128xf32>
    %26 = arith.addf %23, %25 : vector<8x128xf32>
    %cst_12 = arith.constant 0.000000e+00 : f32
    %27 = vector.broadcast %cst_12 : f32 to vector<8x128xf32>
    %28 = arith.maximumf %26, %27 : vector<8x128xf32>
    %29 = arith.addf %0, %28 : vector<8x128xf32>
    %cst_13 = arith.constant dense<0.000000e+00> : vector<8xf32>
    %30 = vector.multi_reduction <add>, %29, %cst_13 [1] : vector<8x128xf32> to vector<8xf32>
    %31 = vector.shape_cast %30 : vector<8xf32> to vector<8x1xf32>
    %cst_14 = arith.constant 3.125000e-02 : f32
    %32 = vector.broadcast %cst_14 : f32 to vector<8x1xf32>
    %33 = arith.mulf %31, %32 : vector<8x1xf32>
    %34 = arith.mulf %29, %29 : vector<8x128xf32>
    %cst_15 = arith.constant dense<0.000000e+00> : vector<8xf32>
    %35 = vector.multi_reduction <add>, %34, %cst_15 [1] : vector<8x128xf32> to vector<8xf32>
    %36 = vector.shape_cast %35 : vector<8xf32> to vector<8x1xf32>
    %cst_16 = arith.constant 3.125000e-02 : f32
    %37 = vector.broadcast %cst_16 : f32 to vector<8x1xf32>
    %38 = arith.mulf %36, %37 : vector<8x1xf32>
    %39 = arith.mulf %33, %33 : vector<8x1xf32>
    %40 = arith.subf %38, %39 : vector<8x1xf32>
    %cst_17 = arith.constant 0.000000e+00 : f32
    %41 = vector.broadcast %cst_17 : f32 to vector<8x1xf32>
    %42 = arith.maximumf %40, %41 : vector<8x1xf32>
    %cst_18 = arith.constant 9.99999974E-6 : f32
    %43 = vector.broadcast %cst_18 : f32 to vector<8x1xf32>
    %44 = arith.addf %42, %43 : vector<8x1xf32>
    %45 = math.rsqrt %44 : vector<8x1xf32>
    %46 = vector.broadcast %33 : vector<8x1xf32> to vector<8x128xf32>
    %47 = arith.subf %29, %46 : vector<8x128xf32>
    %48 = vector.broadcast %45 : vector<8x1xf32> to vector<8x128xf32>
    %49 = arith.mulf %47, %48 : vector<8x128xf32>
    %c0_19 = arith.constant 0 : index
    %c0_20 = arith.constant 0 : index
    %50 = vector.load %arg5[%c0_19, %c0_20] : memref<1x128xf32, #tpu.memory_space<vmem>>, vector<1x128xf32>
    %51 = vector.broadcast %50 : vector<1x128xf32> to vector<8x128xf32>
    %52 = arith.mulf %49, %51 : vector<8x128xf32>
    %c0_21 = arith.constant 0 : index
    %c0_22 = arith.constant 0 : index
    %53 = vector.load %arg6[%c0_21, %c0_22] : memref<1x128xf32, #tpu.memory_space<vmem>>, vector<1x128xf32>
    %54 = vector.broadcast %53 : vector<1x128xf32> to vector<8x128xf32>
    %55 = arith.addf %52, %54 : vector<8x128xf32>
    %c0_23 = arith.constant 0 : index
    %c0_24 = arith.constant 0 : index
    %56 = vector.load %arg7[%c0_23, %c0_24] : memref<8x128xf32, #tpu.memory_space<vmem>>, vector<8x128xf32>
    tpu.vector_store %arg7[%c0_23, %c0_24], %55 {strides = array<i32>} : memref<8x128xf32, #tpu.memory_space<vmem>>, vector<8x128xf32>,
    return
  }
  func.func @transform_0(%arg0: i32) -> (i32, i32) {
    %c0_i32 = arith.constant 0 : i32
    %c0_i32_0 = arith.constant 0 : i32
    return %arg0, %c0_i32 : i32, i32
  }
  func.func @transform_1(%arg0: i32) -> (i32, i32) {
    %c0_i32 = arith.constant 0 : i32
    %c0_i32_0 = arith.constant 0 : i32
    %c0_i32_1 = arith.constant 0 : i32
    return %c0_i32, %c0_i32_0 : i32, i32
  }
  func.func @transform_2(%arg0: i32) -> (i32, i32) {
    %c0_i32 = arith.constant 0 : i32
    %c0_i32_0 = arith.constant 0 : i32
    %c0_i32_1 = arith.constant 0 : i32
    return %c0_i32, %c0_i32_0 : i32, i32
  }
  func.func @transform_3(%arg0: i32) -> (i32, i32) {
    %c0_i32 = arith.constant 0 : i32
    %c0_i32_0 = arith.constant 0 : i32
    %c0_i32_1 = arith.constant 0 : i32
    return %c0_i32, %c0_i32_0 : i32, i32
  }
  func.func @transform_4(%arg0: i32) -> (i32, i32) {
    %c0_i32 = arith.constant 0 : i32
    %c0_i32_0 = arith.constant 0 : i32
    %c0_i32_1 = arith.constant 0 : i32
    return %c0_i32, %c0_i32_0 : i32, i32
  }
  func.func @transform_5(%arg0: i32) -> (i32, i32) {
    %c0_i32 = arith.constant 0 : i32
    %c0_i32_0 = arith.constant 0 : i32
    %c0_i32_1 = arith.constant 0 : i32
    return %c0_i32, %c0_i32_0 : i32, i32
  }
  func.func @transform_6(%arg0: i32) -> (i32, i32) {
    %c0_i32 = arith.constant 0 : i32
    %c0_i32_0 = arith.constant 0 : i32
    return %arg0, %c0_i32 : i32, i32
  }
}

</mosaic_0001>

<llo_original>
// kernel: tpu_custom_call.1
$region0: #{tpu_custom_call.1}
  #allocation0 [shape = 'u32[]', space=smem, size = 0x4, offset = 0x4, fixed_abs, tag = 'smem constant byte address 0x4 - core index']
  #allocation1 [shape = 'u32[144,128]{1,0:T(1,128)}', space=vmem, size = 0x12000, scoped, tag = 'internal scratch']
  %s0 = inlined_call_operand.hbm [shape: f32[16,128], index: 0, kind: input, shape index: {}]
  %s1 = inlined_call_operand.hbm [shape: f32[128,384], index: 1, kind: input, shape index: {}]
  %s2 = inlined_call_operand.hbm [shape: f32[128,128], index: 2, kind: input, shape index: {}]
  %s3 = inlined_call_operand.vmem [shape: f32[1,128], index: 3, kind: input, shape index: {}]
  %s4 = inlined_call_operand.vmem [shape: f32[1,128], index: 4, kind: input, shape index: {}]
  %s5 = inlined_call_operand.vmem [shape: f32[1,128], index: 5, kind: input, shape index: {}]
  %s6 = inlined_call_operand.hbm [shape: f32[16,128], index: 6, kind: output, shape index: {}]
  %s7 = sld [smem:[#allocation0]]
  $region69: #{tpu_custom_call.1} parent=0
    _
  %s9 = ssub.s32 1, %s7
  %s10 = scalar_select 0, %s9, %s7
  $region1: #{tpu_custom_call.1} parent=0
    #allocation2 [shape = 'u8[8192]{0}', space=vmem, size = 0x2000, scoped, tag = 'input window, operand 0']
    #allocation3 [shape = 's32[2]{0}', space=sflag, size = 0x8, scoped, tag = 'scoped memory for tpu_custom_call.1']
    #allocation4 [shape = 's32[2]{0}', space=sflag, size = 0x8, scoped, tag = 'scoped memory for tpu_custom_call.1']
    #allocation5 [shape = 'u8[196608]{0}', space=vmem, size = 0x30000, scoped, tag = 'input window, operand 1, single buffered']
    #allocation6 [shape = 's32[1]{0}', space=sflag, size = 0x4, scoped, tag = 'scoped memory for tpu_custom_call.1']
    #allocation7 [shape = 'u8[65536]{0}', space=vmem, size = 0x10000, scoped, tag = 'input window, operand 2, single buffered']
    #allocation8 [shape = 'u8[8192]{0}', space=vmem, size = 0x2000, scoped, tag = 'output window, operand 0']
    %11 = vsyncpa [#allocation3], 0
    %s12 = scalar_lea.sflag [#allocation3], 1
    %13 = vsyncpa %s12, 0
    %14 = vsyncpa [#allocation6], 0
    %15 = vsyncpa [#allocation4], 0
    %s16 = scalar_lea.sflag [#allocation4], 1
    %17 = vsyncpa %s16, 0
    loop: start=0, step=1, limit=4
    $region2: #{tpu_custom_call.1} parent=1 // loop_pre_header
      _
    $region3: #{tpu_custom_call.1} parent=1 // loop_header
      %s19 = sphi 0, %s23
      %p20 = scmp.ge.s32.totalorder %s19, 4
      %s29 = sphi 0, %s31
      %s32 = sphi 0, %s29
      %s33 = sphi 0, %s32
      %s49 = sphi 0, %s33
      %s53 = sphi 0, %s53
      %s55 = sphi 0, %s53
      %s56 = sphi 0, %s55
      %s70 = sphi 0, %s56
      %s74 = sphi 0, %s74
      %s76 = sphi 0, %s74
      %s77 = sphi 0, %s76
      %s91 = sphi 0, %s77
      %s95 = sphi 0, %s95
      %s97 = sphi 0, %s95
      %s98 = sphi 0, %s97
      %s112 = sphi 0, %s98
      %s116 = sphi 0, %s116
      %s118 = sphi 0, %s116
      %s119 = sphi 0, %s118
      %s133 = sphi 0, %s119
      %s137 = sphi 0, %s137
      %s139 = sphi 0, %s137
      %s140 = sphi 0, %s139
      %s154 = sphi 0, %s140
      %s160 = sphi 0, %s162
      %s163 = sphi 0, %s160
      %s164 = sphi 0, %s163
      %s180 = sphi 0, %s164
    $region4: #{tpu_custom_call.1} parent=1 // loop_header_branch
      %22 = sbr.rel (%p20) target = $region8
    $region5: #{tpu_custom_call.1} parent=1 // loop_body
      %s24 = ssub.s32 %s19, 1
      %s25 = ssub.s32 %s19, 2
      %s26 = sadd.s32 %s19, 1
      %s27 = ssub.s32 %s19, %s26
      %p28 = scmp.eq.s32.totalorder %s27, 0
      %s30 = sadd.s32 %s29, 1
      %s31 = scalar_select %p28, %s29, %s30
      %p34 = pneg %p28
      %p35 = scmp.eq.s32.totalorder %s19, 1
      %p36 = por %p34, %p35
      %p37 = scmp.ne.s32.totalorder %s29, %s32
      %p38 = scmp.eq.s32.totalorder %s19, 0
      %p39 = por %p37, %p38
      %p40 = scmp.ne.s32.totalorder %s29, %s32
      %p41 = scmp.eq.s32.totalorder %s24, 1
      %p42 = por %p40, %p41
      %p43 = scmp.ne.s32.totalorder %s32, %s33
      %p44 = scmp.eq.s32.totalorder %s24, 0
      %p45 = por %p43, %p44
      %p46 = scmp.ne.s32.totalorder %s32, %s33
      %p47 = scmp.eq.s32.totalorder %s25, 1
      %p48 = por %p46, %p47
      %p50 = scmp.ne.s32.totalorder %s33, %s49
      %p51 = scmp.eq.s32.totalorder %s25, 0
      %p52 = por %p50, %p51
      %s54 = sadd.s32 %s53, 1
      %p57 = scmp.eq.s32.totalorder %s19, 1
      %p58 = scmp.ne.s32.totalorder %s53, %s55
      %p59 = scmp.eq.s32.totalorder %s19, 0
      %p60 = por %p58, %p59
      %p61 = scmp.ne.s32.totalorder %s53, %s55
      %p62 = scmp.eq.s32.totalorder %s24, 1
      %p63 = por %p61, %p62
      %p64 = scmp.ne.s32.totalorder %s55, %s56
      %p65 = scmp.eq.s32.totalorder %s24, 0
      %p66 = por %p64, %p65
      %p67 = scmp.ne.s32.totalorder %s55, %s56
      %p68 = scmp.eq.s32.totalorder %s25, 1
      %p69 = por %p67, %p68
      %p71 = scmp.ne.s32.totalorder %s56, %s70
      %p72 = scmp.eq.s32.totalorder %s25, 0
      %p73 = por %p71, %p72
      %s75 = sadd.s32 %s74, 1
      %p78 = scmp.eq.s32.totalorder %s19, 1
      %p79 = scmp.ne.s32.totalorder %s74, %s76
      %p80 = scmp.eq.s32.totalorder %s19, 0
      %p81 = por %p79, %p80
      %p82 = scmp.ne.s32.totalorder %s74, %s76
      %p83 = scmp.eq.s32.totalorder %s24, 1
      %p84 = por %p82, %p83
      %p85 = scmp.ne.s32.totalorder %s76, %s77
      %p86 = scmp.eq.s32.totalorder %s24, 0
      %p87 = por %p85, %p86
      %p88 = scmp.ne.s32.totalorder %s76, %s77
      %p89 = scmp.eq.s32.totalorder %s25, 1
      %p90 = por %p88, %p89
      %p92 = scmp.ne.s32.totalorder %s77, %s91
      %p93 = scmp.eq.s32.totalorder %s25, 0
      %p94 = por %p92, %p93
      %s96 = sadd.s32 %s95, 1
      %p99 = scmp.eq.s32.totalorder %s19, 1
      %p100 = scmp.ne.s32.totalorder %s95, %s97
      %p101 = scmp.eq.s32.totalorder %s19, 0
      %p102 = por %p100, %p101
      %p103 = scmp.ne.s32.totalorder %s95, %s97
      %p104 = scmp.eq.s32.totalorder %s24, 1
      %p105 = por %p103, %p104
      %p106 = scmp.ne.s32.totalorder %s97, %s98
      %p107 = scmp.eq.s32.totalorder %s24, 0
      %p108 = por %p106, %p107
      %p109 = scmp.ne.s32.totalorder %s97, %s98
      %p110 = scmp.eq.s32.totalorder %s25, 1
      %p111 = por %p109, %p110
      %p113 = scmp.ne.s32.totalorder %s98, %s112
      %p114 = scmp.eq.s32.totalorder %s25, 0
      %p115 = por %p113, %p114
      %s117 = sadd.s32 %s116, 1
      %p120 = scmp.eq.s32.totalorder %s19, 1
      %p121 = scmp.ne.s32.totalorder %s116, %s118
      %p122 = scmp.eq.s32.totalorder %s19, 0
      %p123 = por %p121, %p122
      %p124 = scmp.ne.s32.totalorder %s116, %s118
      %p125 = scmp.eq.s32.totalorder %s24, 1
      %p126 = por %p124, %p125
      %p127 = scmp.ne.s32.totalorder %s118, %s119
      %p128 = scmp.eq.s32.totalorder %s24, 0
      %p129 = por %p127, %p128
      %p130 = scmp.ne.s32.totalorder %s118, %s119
      %p131 = scmp.eq.s32.totalorder %s25, 1
      %p132 = por %p130, %p131
      %p134 = scmp.ne.s32.totalorder %s119, %s133
      %p135 = scmp.eq.s32.totalorder %s25, 0
      %p136 = por %p134, %p135
      %s138 = sadd.s32 %s137, 1
      %p141 = scmp.eq.s32.totalorder %s19, 1
      %p142 = scmp.ne.s32.totalorder %s137, %s139
      %p143 = scmp.eq.s32.totalorder %s19, 0
      %p144 = por %p142, %p143
      %p145 = scmp.ne.s32.totalorder %s137, %s139
      %p146 = scmp.eq.s32.totalorder %s24, 1
      %p147 = por %p145, %p146
      %p148 = scmp.ne.s32.totalorder %s139, %s140
      %p149 = scmp.eq.s32.totalorder %s24, 0
      %p150 = por %p148, %p149
      %p151 = scmp.ne.s32.totalorder %s139, %s140
      %p152 = scmp.eq.s32.totalorder %s25, 1
      %p153 = por %p151, %p152
      %p155 = scmp.ne.s32.totalorder %s140, %s154
      %p156 = scmp.eq.s32.totalorder %s25, 0
      %p157 = por %p155, %p156
      %s158 = ssub.s32 %s19, %s26
      %p159 = scmp.eq.s32.totalorder %s158, 0
      %s161 = sadd.s32 %s160, 1
      %s162 = scalar_select %p159, %s160, %s161
      %p165 = pneg %p159
      %p166 = scmp.eq.s32.totalorder %s19, 1
      %p167 = por %p165, %p166
      %p168 = scmp.ne.s32.totalorder %s160, %s163
      %p169 = scmp.eq.s32.totalorder %s19, 0
      %p170 = por %p168, %p169
      %p171 = scmp.ne.s32.totalorder %s160, %s163
      %p172 = scmp.eq.s32.totalorder %s24, 1
      %p173 = por %p171, %p172
      %p174 = scmp.ne.s32.totalorder %s163, %s164
      %p175 = scmp.eq.s32.totalorder %s24, 0
      %p176 = por %p174, %p175
      %p177 = scmp.ne.s32.totalorder %s163, %s164
      %p178 = scmp.eq.s32.totalorder %s25, 1
      %p179 = por %p177, %p178
      %p181 = scmp.ne.s32.totalorder %s164, %s180
      %p182 = scmp.eq.s32.totalorder %s25, 0
      %p183 = por %p181, %p182
      %p184 = scmp.le.s32.totalorder 1, %s19
      %p185 = scmp.lt.s32.totalorder %s19, 3
      %p186 = pnand %p184, %p185
      %p187 = pneg %p186
      // Predicated region
      $region9: #{tpu_custom_call.1} parent=5 // pred_check
        _
      $region10: #{tpu_custom_call.1} parent=5 // pred_check_branch
        %189 = sbr.rel (%p186) target = $region12
      $region11: #{tpu_custom_call.1} parent=5 // pred_region
        %s190 = ssub.s32 %s19, 1
        // Predicated region
        $region13: #{tpu_custom_call.1} parent=11 // pred_check
          %p191 = pneg %p66
        $region14: #{tpu_custom_call.1} parent=11 // pred_check_branch
          %193 = sbr.rel (%p191) target = $region16
        $region15: #{tpu_custom_call.1} parent=11 // pred_region
          %s195 = ssub.s32 6144, 6144
          %196 = vsyncadd [#allocation6], %s195
          %s197 = sshll.u32 [#allocation5], 4
          %s198 = int_to_ptr.vmem [resolvable:$true] %s197
          %203 = dma.hbm_to_vmem [thread:$0]  %s1, 6144, %s198, [#allocation6], 384, 384, 24
        $region16: #{tpu_custom_call.1} parent=11 // pred_fallthru
          _
        // Predicated region
        $region17: #{tpu_custom_call.1} parent=11 // pred_check
          %p204 = pneg %p87
        $region18: #{tpu_custom_call.1} parent=11 // pred_check_branch
          %206 = sbr.rel (%p204) target = $region20
        $region19: #{tpu_custom_call.1} parent=11 // pred_region
          %s208 = ssub.s32 2048, 2048
          %209 = vsyncadd [#allocation6], %s208
          %s210 = sshll.u32 [#allocation7], 4
          %s211 = int_to_ptr.vmem [resolvable:$true] %s210
          %216 = dma.hbm_to_vmem [thread:$0]  %s2, 2048, %s211, [#allocation6], 128, 128, 8
        $region20: #{tpu_custom_call.1} parent=11 // pred_fallthru
          _
        // Predicated region
        $region21: #{tpu_custom_call.1} parent=11 // pred_check
          %p217 = pneg %p108
        $region22: #{tpu_custom_call.1} parent=11 // pred_check_branch
          %219 = sbr.rel (%p217) target = $region24
        $region23: #{tpu_custom_call.1} parent=11 // pred_region
          _
        $region24: #{tpu_custom_call.1} parent=11 // pred_fallthru
          _
        // Predicated region
        $region25: #{tpu_custom_call.1} parent=11 // pred_check
          %p220 = pneg %p129
        $region26: #{tpu_custom_call.1} parent=11 // pred_check_branch
          %222 = sbr.rel (%p220) target = $region28
        $region27: #{tpu_custom_call.1} parent=11 // pred_region
          _
        $region28: #{tpu_custom_call.1} parent=11 // pred_fallthru
          _
        // Predicated region
        $region29: #{tpu_custom_call.1} parent=11 // pred_check
          %p223 = pneg %p150
        $region30: #{tpu_custom_call.1} parent=11 // pred_check_branch
          %225 = sbr.rel (%p223) target = $region32
        $region31: #{tpu_custom_call.1} parent=11 // pred_region
          _
        $region32: #{tpu_custom_call.1} parent=11 // pred_fallthru
          _
      $region12: #{tpu_custom_call.1} parent=5 // pred_fallthru
        _
      %p226 = scmp.lt.s32.totalorder %s19, 2
      // Predicated region
      $region33: #{tpu_custom_call.1} parent=5 // pred_check
        %p227 = pneg %p226
      $region34: #{tpu_custom_call.1} parent=5 // pred_check_branch
        %229 = sbr.rel (%p227) target = $region36
      $region35: #{tpu_custom_call.1} parent=5 // pred_region
        // Predicated region
        $region37: #{tpu_custom_call.1} parent=35 // pred_check
          %p230 = pneg %p39
        $region38: #{tpu_custom_call.1} parent=35 // pred_check_branch
          %232 = sbr.rel (%p230) target = $region40
        $region39: #{tpu_custom_call.1} parent=35 // pred_region
          %s233 = sand.u32 %s29, 1
          %s234 = scalar_lea.sflag [#allocation3], %s233
          %s235 = sand.u32 %s29, 1
          %s236 = smul.addr %s235, 8
          %s237 = scalar_lea.vmem [#allocation2], %s236
          %s239 = ssub.s32 128, 128
          %240 = vsyncadd %s234, %s239
          %s241 = smul.addr %s19, 128
          %s242 = scalar_lea.hbm %s0, %s241
          %s244 = sshll.u32 %s237, 4
          %s245 = int_to_ptr.vmem [resolvable:$true] %s244
          %247 = dma.hbm_to_vmem [thread:$0]  %s242, 128, %s245, %s234
        $region40: #{tpu_custom_call.1} parent=35 // pred_fallthru
          _
      $region36: #{tpu_custom_call.1} parent=5 // pred_fallthru
        _
      %p248 = scmp.le.s32.totalorder 1, %s19
      %p249 = scmp.lt.s32.totalorder %s19, 3
      %p250 = pnand %p248, %p249
      %p251 = pneg %p250
      // Predicated region
      $region41: #{tpu_custom_call.1} parent=5 // pred_check
        _
      $region42: #{tpu_custom_call.1} parent=5 // pred_check_branch
        %253 = sbr.rel (%p250) target = $region44
      $region43: #{tpu_custom_call.1} parent=5 // pred_region
        %s254 = ssub.s32 %s19, 1
        %s255 = sand.u32 %s32, 1
        %s256 = scalar_lea.sflag [#allocation3], %s255
        %s257 = sand.u32 %s32, 1
        %s258 = smul.addr %s257, 8
        %s259 = scalar_lea.vmem [#allocation2], %s258
        // Predicated region
        $region45: #{tpu_custom_call.1} parent=43 // pred_check
          %p260 = pneg %p45
        $region46: #{tpu_custom_call.1} parent=43 // pred_check_branch
          %262 = sbr.rel (%p260) target = $region48
        $region47: #{tpu_custom_call.1} parent=43 // pred_region
          %263 = dma.done %s256, 128
        $region48: #{tpu_custom_call.1} parent=43 // pred_fallthru
          _
        // Predicated region
        $region49: #{tpu_custom_call.1} parent=43 // pred_check
          %p264 = pneg %p66
        $region50: #{tpu_custom_call.1} parent=43 // pred_check_branch
          %266 = sbr.rel (%p264) target = $region52
        $region51: #{tpu_custom_call.1} parent=43 // pred_region
          %267 = dma.done [#allocation6], 6144
        $region52: #{tpu_custom_call.1} parent=43 // pred_fallthru
          _
        // Predicated region
        $region53: #{tpu_custom_call.1} parent=43 // pred_check
          %p268 = pneg %p87
        $region54: #{tpu_custom_call.1} parent=43 // pred_check_branch
          %270 = sbr.rel (%p268) target = $region56
        $region55: #{tpu_custom_call.1} parent=43 // pred_region
          %271 = dma.done [#allocation6], 2048
        $region56: #{tpu_custom_call.1} parent=43 // pred_fallthru
          _
        %s272 = sand.u32 %s32, 1
        %s273 = scalar_lea.sflag [#allocation3], %s272
        %s274 = sand.u32 %s32, 1
        %s275 = smul.addr %s274, 8
        %s276 = scalar_lea.vmem [#allocation2], %s275
        %p277 = pneg %p45
        %p278 = pneg %p42
        %p279 = pneg %p66
        %p280 = pneg %p63
        %p281 = pneg %p87
        %p282 = pneg %p84
        %p283 = pneg %p108
        %p284 = pneg %p105
        %p285 = pneg %p129
        %p286 = pneg %p126
        %p287 = pneg %p150
        %p288 = pneg %p147
        %p289 = pneg %p176
        %p290 = pneg %p173
        %s291 = sand.u32 %s163, 1
        %s292 = scalar_lea.sflag [#allocation4], %s291
        %s293 = sand.u32 %s163, 1
        %s294 = smul.addr %s293, 8
        %s295 = scalar_lea.vmem [#allocation8], %s294
        %v296 = vld [vmem:[%s259] sm:$0xff]
        %v297 = vld [vmem:[#allocation5] sm:$0xff]
        %v298 = vld [vmem:[#allocation5 + $0x8] sm:$0xff]
        %v299 = vld [vmem:[#allocation5 + $0x10] sm:$0xff]
        %v300 = vld [vmem:[#allocation5 + $0x18] sm:$0xff]
        %v301 = vld [vmem:[#allocation5 + $0x20] sm:$0xff]
        %v302 = vld [vmem:[#allocation5 + $0x28] sm:$0xff]
        %v303 = vld [vmem:[#allocation5 + $0x30] sm:$0xff]
        %v304 = vld [vmem:[#allocation5 + $0x38] sm:$0xff]
        %v305 = vld [vmem:[#allocation5 + $0x40] sm:$0xff]
        %v306 = vld [vmem:[#allocation5 + $0x48] sm:$0xff]
        %v307 = vld [vmem:[#allocation5 + $0x50] sm:$0xff]
        %v308 = vld [vmem:[#allocation5 + $0x58] sm:$0xff]
        %v309 = vld [vmem:[#allocation5 + $0x60] sm:$0xff]
        %v310 = vld [vmem:[#allocation5 + $0x68] sm:$0xff]
        %v311 = vld [vmem:[#allocation5 + $0x70] sm:$0xff]
        %v312 = vld [vmem:[#allocation5 + $0x78] sm:$0xff]
        %v313 = vld [vmem:[#allocation5 + $0x80] sm:$0xff]
        %v314 = vld [vmem:[#allocation5 + $0x88] sm:$0xff]
        %v315 = vld [vmem:[#allocation5 + $0x90] sm:$0xff]
        %v316 = vld [vmem:[#allocation5 + $0x98] sm:$0xff]
        %v317 = vld [vmem:[#allocation5 + $0xa0] sm:$0xff]
        %v318 = vld [vmem:[#allocation5 + $0xa8] sm:$0xff]
        %v319 = vld [vmem:[#allocation5 + $0xb0] sm:$0xff]
        %v320 = vld [vmem:[#allocation5 + $0xb8] sm:$0xff]
        %v321 = vld [vmem:[#allocation5 + $0xc0] sm:$0xff]
        %v322 = vld [vmem:[#allocation5 + $0xc8] sm:$0xff]
        %v323 = vld [vmem:[#allocation5 + $0xd0] sm:$0xff]
        %v324 = vld [vmem:[#allocation5 + $0xd8] sm:$0xff]
        %v325 = vld [vmem:[#allocation5 + $0xe0] sm:$0xff]
        %v326 = vld [vmem:[#allocation5 + $0xe8] sm:$0xff]
        %v327 = vld [vmem:[#allocation5 + $0xf0] sm:$0xff]
        %v328 = vld [vmem:[#allocation5 + $0xf8] sm:$0xff]
        %v329 = vld [vmem:[#allocation5 + $0x100] sm:$0xff]
        %v330 = vld [vmem:[#allocation5 + $0x108] sm:$0xff]
        %v331 = vld [vmem:[#allocation5 + $0x110] sm:$0xff]
        %v332 = vld [vmem:[#allocation5 + $0x118] sm:$0xff]
        %v333 = vld [vmem:[#allocation5 + $0x120] sm:$0xff]
        %v334 = vld [vmem:[#allocation5 + $0x128] sm:$0xff]
        %v335 = vld [vmem:[#allocation5 + $0x130] sm:$0xff]
        %v336 = vld [vmem:[#allocation5 + $0x138] sm:$0xff]
        %v337 = vld [vmem:[#allocation5 + $0x140] sm:$0xff]
        %v338 = vld [vmem:[#allocation5 + $0x148] sm:$0xff]
        %v339 = vld [vmem:[#allocation5 + $0x150] sm:$0xff]
        %v340 = vld [vmem:[#allocation5 + $0x158] sm:$0xff]
        %v341 = vld [vmem:[#allocation5 + $0x160] sm:$0xff]
        %v342 = vld [vmem:[#allocation5 + $0x168] sm:$0xff]
        %v343 = vld [vmem:[#allocation5 + $0x170] sm:$0xff]
        %v344 = vld [vmem:[#allocation5 + $0x178] sm:$0xff]
        %345 = vmatprep.subr.mxu0 %v298
        %346 = vmatpush1.msra.mxu0 %v297
        %347 = vmatprep.subr.mxu0 %v301
        %348 = vmatpush1.msra.mxu0 %v300
        %349 = vmatprep.subr.mxu0 %v304
        %350 = vmatpush1.msra.mxu0 %v303
        %351 = vmatprep.subr.mxu0 %v307
        %352 = vmatpush1.msra.mxu0 %v306
        %353 = vmatprep.subr.mxu0 %v310
        %354 = vmatpush1.msra.mxu0 %v309
        %355 = vmatprep.subr.mxu0 %v313
        %356 = vmatpush1.msra.mxu0 %v312
        %357 = vmatprep.subr.mxu0 %v316
        %358 = vmatpush1.msra.mxu0 %v315
        %359 = vmatprep.subr.mxu0 %v319
        %360 = vmatpush1.msra.mxu0 %v318
        %361 = vmatprep.subr.mxu0 %v322
        %362 = vmatpush1.msra.mxu0 %v321
        %363 = vmatprep.subr.mxu0 %v325
        %364 = vmatpush1.msra.mxu0 %v324
        %365 = vmatprep.subr.mxu0 %v328
        %366 = vmatpush1.msra.mxu0 %v327
        %367 = vmatprep.subr.mxu0 %v331
        %368 = vmatpush1.msra.mxu0 %v330
        %369 = vmatprep.subr.mxu0 %v334
        %370 = vmatpush1.msra.mxu0 %v333
        %371 = vmatprep.subr.mxu0 %v337
        %372 = vmatpush1.msra.mxu0 %v336
        %373 = vmatprep.subr.mxu0 %v340
        %374 = vmatpush1.msra.mxu0 %v339
        %375 = vmatprep.subr.mxu0 %v343
        %376 = vmatpush1.msra.mxu0 %v342
        %377 = vmatprep.subr.mxu0 0.0
        %378 = vmatpush1.msra.mxu0 0.0
        %379 = vmatprep.subr.mxu0 0.0
        %380 = vmatpush1.msra.mxu0 0.0
        %381 = vmatprep.subr.mxu0 0.0
        %382 = vmatpush1.msra.mxu0 0.0
        %383 = vmatprep.subr.mxu0 0.0
        %384 = vmatpush1.msra.mxu0 0.0
        %385 = vmatprep.subr.mxu0 0.0
        %386 = vmatpush1.msra.mxu0 0.0
        %387 = vmatprep.subr.mxu0 0.0
        %388 = vmatpush1.msra.mxu0 0.0
        %389 = vmatprep.subr.mxu0 0.0
        %390 = vmatpush1.msra.mxu0 0.0
        %391 = vmatprep.subr.mxu0 0.0
        %392 = vmatpush1.msra.mxu0 0.0
        %393 = vmatprep.subr.mxu0 0.0
        %394 = vmatpush1.msra.mxu0 0.0
        %395 = vmatprep.subr.mxu0 0.0
        %396 = vmatpush1.msra.mxu0 0.0
        %397 = vmatprep.subr.mxu0 0.0
        %398 = vmatpush1.msra.mxu0 0.0
        %399 = vmatprep.subr.mxu0 0.0
        %400 = vmatpush1.msra.mxu0 0.0
        %401 = vmatprep.subr.mxu0 0.0
        %402 = vmatpush1.msra.mxu0 0.0
        %403 = vmatprep.subr.mxu0 0.0
        %404 = vmatpush1.msra.mxu0 0.0
        %405 = vmatprep.subr.mxu0 0.0
        %406 = vmatpush1.msra.mxu0 0.0
        %407 = vmatprep.subr.mxu0 0.0
        %408 = vmatpush1.msra.mxu0 0.0
        %409 = vmatprep.mubr.f32.mxu0 0.0
        %410 = vmatmul.mubr.f32.gmra.mrb[0].mxu0 %v296
        %v411 = vpop.f32.mrb[0].mxu0
        %v412 = vadd.f32 0.0, %v411
        %v413 = vpop.f32.mrb[0].mxu0
        %v414 = vadd.f32 0.0, %v413
        %415 = vdwg.mxu0
        %416 = vmatprep.subr.mxu0 0.0
        %417 = vmatpush1.msra.mxu0 %v299
        %418 = vmatprep.subr.mxu0 0.0
        %419 = vmatpush1.msra.mxu0 %v302
        %420 = vmatprep.subr.mxu0 0.0
        %421 = vmatpush1.msra.mxu0 %v305
        %422 = vmatprep.subr.mxu0 0.0
        %423 = vmatpush1.msra.mxu0 %v308
        %424 = vmatprep.subr.mxu0 0.0
        %425 = vmatpush1.msra.mxu0 %v311
        %426 = vmatprep.subr.mxu0 0.0
        %427 = vmatpush1.msra.mxu0 %v314
        %428 = vmatprep.subr.mxu0 0.0
        %429 = vmatpush1.msra.mxu0 %v317
        %430 = vmatprep.subr.mxu0 0.0
        %431 = vmatpush1.msra.mxu0 %v320
        %432 = vmatprep.subr.mxu0 0.0
        %433 = vmatpush1.msra.mxu0 %v323
        %434 = vmatprep.subr.mxu0 0.0
        %435 = vmatpush1.msra.mxu0 %v326
        %436 = vmatprep.subr.mxu0 0.0
        %437 = vmatpush1.msra.mxu0 %v329
        %438 = vmatprep.subr.mxu0 0.0
        %439 = vmatpush1.msra.mxu0 %v332
        %440 = vmatprep.subr.mxu0 0.0
        %441 = vmatpush1.msra.mxu0 %v335
        %442 = vmatprep.subr.mxu0 0.0
        %443 = vmatpush1.msra.mxu0 %v338
        %444 = vmatprep.subr.mxu0 0.0
        %445 = vmatpush1.msra.mxu0 %v341
        %446 = vmatprep.subr.mxu0 0.0
        %447 = vmatpush1.msra.mxu0 %v344
        %448 = vmatprep.subr.mxu0 0.0
        %449 = vmatpush1.msra.mxu0 0.0
        %450 = vmatprep.subr.mxu0 0.0
        %451 = vmatpush1.msra.mxu0 0.0
        %452 = vmatprep.subr.mxu0 0.0
        %453 = vmatpush1.msra.mxu0 0.0
        %454 = vmatprep.subr.mxu0 0.0
        %455 = vmatpush1.msra.mxu0 0.0
        %456 = vmatprep.subr.mxu0 0.0
        %457 = vmatpush1.msra.mxu0 0.0
        %458 = vmatprep.subr.mxu0 0.0
        %459 = vmatpush1.msra.mxu0 0.0
        %460 = vmatprep.subr.mxu0 0.0
        %461 = vmatpush1.msra.mxu0 0.0
        %462 = vmatprep.subr.mxu0 0.0
        %463 = vmatpush1.msra.mxu0 0.0
        %464 = vmatprep.subr.mxu0 0.0
        %465 = vmatpush1.msra.mxu0 0.0
        %466 = vmatprep.subr.mxu0 0.0
        %467 = vmatpush1.msra.mxu0 0.0
        %468 = vmatprep.subr.mxu0 0.0
        %469 = vmatpush1.msra.mxu0 0.0
        %470 = vmatprep.subr.mxu0 0.0
        %471 = vmatpush1.msra.mxu0 0.0
        %472 = vmatprep.subr.mxu0 0.0
        %473 = vmatpush1.msra.mxu0 0.0
        %474 = vmatprep.subr.mxu0 0.0
        %475 = vmatpush1.msra.mxu0 0.0
        %476 = vmatprep.subr.mxu0 0.0
        %477 = vmatpush1.msra.mxu0 0.0
        %478 = vmatprep.subr.mxu0 0.0
        %479 = vmatpush1.msra.mxu0 0.0
        %480 = vmatprep.mubr.f32.mxu0 0.0
        %481 = vmatmul.mubr.f32.gmra.mrb[0].mxu0 %v296
        %v482 = vpop.f32.mrb[0].mxu0
        %v483 = vadd.f32 0.0, %v482
        %v484 = vpop.f32.mrb[0].mxu0
        %485 = vdwg.mxu0
        %486 = vmatprep.subr.mxu0 0.0
        %487 = vmatpush1.xpose.msra.mxu0 %v414
        %488 = vmatprep.subr.mxu0 0.0
        %489 = vmatpush1.xpose.msra.mxu0 0.0
        %490 = vmatprep.subr.mxu0 0.0
        %491 = vmatpush1.xpose.msra.mxu0 0.0
        %492 = vmatprep.subr.mxu0 0.0
        %493 = vmatpush1.xpose.msra.mxu0 0.0
        %494 = vmatprep.subr.mxu0 0.0
        %495 = vmatpush1.xpose.msra.mxu0 0.0
        %496 = vmatprep.subr.mxu0 0.0
        %497 = vmatpush1.xpose.msra.mxu0 0.0
        %498 = vmatprep.subr.mxu0 0.0
        %499 = vmatpush1.xpose.msra.mxu0 0.0
        %500 = vmatprep.subr.mxu0 0.0
        %501 = vmatpush1.xpose.msra.mxu0 0.0
        %502 = vmatprep.subr.mxu0 0.0
        %503 = vmatpush1.xpose.msra.mxu0 0.0
        %504 = vmatprep.subr.mxu0 0.0
        %505 = vmatpush1.xpose.msra.mxu0 0.0
        %506 = vmatprep.subr.mxu0 0.0
        %507 = vmatpush1.xpose.msra.mxu0 0.0
        %508 = vmatprep.subr.mxu0 0.0
        %509 = vmatpush1.xpose.msra.mxu0 0.0
        %510 = vmatprep.subr.mxu0 0.0
        %511 = vmatpush1.xpose.msra.mxu0 0.0
        %512 = vmatprep.subr.mxu0 0.0
        %513 = vmatpush1.xpose.msra.mxu0 0.0
        %514 = vmatprep.subr.mxu0 0.0
        %515 = vmatpush1.xpose.msra.mxu0 0.0
        %516 = vmatprep.subr.mxu0 0.0
        %517 = vmatpush1.xpose.msra.mxu0 0.0
        %518 = vmatprep.subr.mxu0 0.0
        %519 = vmatpush1.xpose.msra.mxu0 0.0
        %520 = vmatprep.subr.mxu0 0.0
        %521 = vmatpush1.xpose.msra.mxu0 0.0
        %522 = vmatprep.subr.mxu0 0.0
        %523 = vmatpush1.xpose.msra.mxu0 0.0
        %524 = vmatprep.subr.mxu0 0.0
        %525 = vmatpush1.xpose.msra.mxu0 0.0
        %526 = vmatprep.subr.mxu0 0.0
        %527 = vmatpush1.xpose.msra.mxu0 0.0
        %528 = vmatprep.subr.mxu0 0.0
        %529 = vmatpush1.xpose.msra.mxu0 0.0
        %530 = vmatprep.subr.mxu0 0.0
        %531 = vmatpush1.xpose.msra.mxu0 0.0
        %532 = vmatprep.subr.mxu0 0.0
        %533 = vmatpush1.xpose.msra.mxu0 0.0
        %534 = vmatprep.subr.mxu0 0.0
        %535 = vmatpush1.xpose.msra.mxu0 0.0
        %536 = vmatprep.subr.mxu0 0.0
        %537 = vmatpush1.xpose.msra.mxu0 0.0
        %538 = vmatprep.subr.mxu0 0.0
        %539 = vmatpush1.xpose.msra.mxu0 0.0
        %540 = vmatprep.subr.mxu0 0.0
        %541 = vmatpush1.xpose.msra.mxu0 0.0
        %542 = vmatprep.subr.mxu0 0.0
        %543 = vmatpush1.xpose.msra.mxu0 0.0
        %544 = vmatprep.subr.mxu0 0.0
        %545 = vmatpush1.xpose.msra.mxu0 0.0
        %546 = vmatprep.subr.mxu0 0.0
        %547 = vmatpush1.xpose.msra.mxu0 0.0
        %548 = vmatprep.subr.mxu0 0.0
        %549 = vmatpush1.xpose.msra.mxu0 0.0
        %550 = vmatprep.mubr.f32.mxu0 0.0
        %551 = vmatmul.mubr.f32.gmra.mrb[0].mxu0 %v412
        %v552 = vpop.f32.mrb[0].mxu0
        %v553 = vadd.f32 0.0, %v552
        %v554 = vpop.f32.mrb[0].mxu0
        %555 = vdwg.mxu0
        %vm556 = vcmask 64512
        %v557 = vsel %vm556, %v553, -inf
        %558 = vmax.xlane.f32.xlu0 %v557
        %v559 = vpop.xlane.xlu0 %558
        %v560 = vsub.f32 %v553, %v559
        %v561 = vmul.f32 %v560, 1.442695
        %v562 = vpow.pop %v561
        %v563 = vsel %vm556, %v562, 0.0
        %564 = vadd.xlane.f32.xlu0 %v563
        %v565 = vpop.xlane.xlu0 %564
        %v566 = vrcp.pop %v565
        %v568 = vsel %vm556, %v562, 0
        %570 = vmatprep.subr.mxu0 0.0
        %571 = vmatpush1.msra.mxu0 %v483
        %572 = vmatprep.subr.mxu0 0.0
        %573 = vmatpush1.msra.mxu0 0.0
        %574 = vmatprep.subr.mxu0 0.0
        %575 = vmatpush1.msra.mxu0 0.0
        %576 = vmatprep.subr.mxu0 0.0
        %577 = vmatpush1.msra.mxu0 0.0
        %578 = vmatprep.subr.mxu0 0.0
        %579 = vmatpush1.msra.mxu0 0.0
        %580 = vmatprep.subr.mxu0 0.0
        %581 = vmatpush1.msra.mxu0 0.0
        %582 = vmatprep.subr.mxu0 0.0
        %583 = vmatpush1.msra.mxu0 0.0
        %584 = vmatprep.subr.mxu0 0.0
        %585 = vmatpush1.msra.mxu0 0.0
        %586 = vmatprep.subr.mxu0 0.0
        %587 = vmatpush1.msra.mxu0 0.0
        %588 = vmatprep.subr.mxu0 0.0
        %589 = vmatpush1.msra.mxu0 0.0
        %590 = vmatprep.subr.mxu0 0.0
        %591 = vmatpush1.msra.mxu0 0.0
        %592 = vmatprep.subr.mxu0 0.0
        %593 = vmatpush1.msra.mxu0 0.0
        %594 = vmatprep.subr.mxu0 0.0
        %595 = vmatpush1.msra.mxu0 0.0
        %596 = vmatprep.subr.mxu0 0.0
        %597 = vmatpush1.msra.mxu0 0.0
        %598 = vmatprep.subr.mxu0 0.0
        %599 = vmatpush1.msra.mxu0 0.0
        %600 = vmatprep.subr.mxu0 0.0
        %601 = vmatpush1.msra.mxu0 0.0
        %602 = vmatprep.subr.mxu0 0.0
        %603 = vmatpush1.msra.mxu0 0.0
        %604 = vmatprep.subr.mxu0 0.0
        %605 = vmatpush1.msra.mxu0 0.0
        %606 = vmatprep.subr.mxu0 0.0
        %607 = vmatpush1.msra.mxu0 0.0
        %608 = vmatprep.subr.mxu0 0.0
        %609 = vmatpush1.msra.mxu0 0.0
        %610 = vmatprep.subr.mxu0 0.0
        %611 = vmatpush1.msra.mxu0 0.0
        %612 = vmatprep.subr.mxu0 0.0
        %613 = vmatpush1.msra.mxu0 0.0
        %614 = vmatprep.subr.mxu0 0.0
        %615 = vmatpush1.msra.mxu0 0.0
        %616 = vmatprep.subr.mxu0 0.0
        %617 = vmatpush1.msra.mxu0 0.0
        %618 = vmatprep.subr.mxu0 0.0
        %619 = vmatpush1.msra.mxu0 0.0
        %620 = vmatprep.subr.mxu0 0.0
        %621 = vmatpush1.msra.mxu0 0.0
        %622 = vmatprep.subr.mxu0 0.0
        %623 = vmatpush1.msra.mxu0 0.0
        %624 = vmatprep.subr.mxu0 0.0
        %625 = vmatpush1.msra.mxu0 0.0
        %626 = vmatprep.subr.mxu0 0.0
        %627 = vmatpush1.msra.mxu0 0.0
        %628 = vmatprep.subr.mxu0 0.0
        %629 = vmatpush1.msra.mxu0 0.0
        %630 = vmatprep.subr.mxu0 0.0
        %631 = vmatpush1.msra.mxu0 0.0
        %632 = vmatprep.subr.mxu0 0.0
        %633 = vmatpush1.msra.mxu0 0.0
        %634 = vmatprep.mubr.f32.mxu0 0.0
        %635 = vmatmul.mubr.f32.gmra.mrb[0].mxu0 %v568
        %v636 = vpop.f32.mrb[0].mxu0
        %v637 = vadd.f32 0.0, %v636
        %v638 = vpop.f32.mrb[0].mxu0
        %639 = vdwg.mxu0
        %v640 = vmul.f32 %v637, %v566
        %v641 = vld [vmem:[#allocation7] sm:$0xff]
        %v642 = vld [vmem:[#allocation7 + $0x8] sm:$0xff]
        %v643 = vld [vmem:[#allocation7 + $0x10] sm:$0xff]
        %v644 = vld [vmem:[#allocation7 + $0x18] sm:$0xff]
        %v645 = vld [vmem:[#allocation7 + $0x20] sm:$0xff]
        %v646 = vld [vmem:[#allocation7 + $0x28] sm:$0xff]
        %v647 = vld [vmem:[#allocation7 + $0x30] sm:$0xff]
        %v648 = vld [vmem:[#allocation7 + $0x38] sm:$0xff]
        %v649 = vld [vmem:[#allocation7 + $0x40] sm:$0xff]
        %v650 = vld [vmem:[#allocation7 + $0x48] sm:$0xff]
        %v651 = vld [vmem:[#allocation7 + $0x50] sm:$0xff]
        %v652 = vld [vmem:[#allocation7 + $0x58] sm:$0xff]
        %v653 = vld [vmem:[#allocation7 + $0x60] sm:$0xff]
        %v654 = vld [vmem:[#allocation7 + $0x68] sm:$0xff]
        %v655 = vld [vmem:[#allocation7 + $0x70] sm:$0xff]
        %v656 = vld [vmem:[#allocation7 + $0x78] sm:$0xff]
        %v657 = vld [vmem:[%s3] sm:$0x1]
        %v659 = vlaneseq
        %v660 = vshrl.u32 %v659, 7
        %v661 = vsub.s32 0, %v660
        %v662 = vrot.slane %v657, %v661
        %664 = vmatprep.subr.mxu0 0.0
        %665 = vmatpush1.msra.mxu0 %v641
        %666 = vmatprep.subr.mxu0 0.0
        %667 = vmatpush1.msra.mxu0 %v642
        %668 = vmatprep.subr.mxu0 0.0
        %669 = vmatpush1.msra.mxu0 %v643
        %670 = vmatprep.subr.mxu0 0.0
        %671 = vmatpush1.msra.mxu0 %v644
        %672 = vmatprep.subr.mxu0 0.0
        %673 = vmatpush1.msra.mxu0 %v645
        %674 = vmatprep.subr.mxu0 0.0
        %675 = vmatpush1.msra.mxu0 %v646
        %676 = vmatprep.subr.mxu0 0.0
        %677 = vmatpush1.msra.mxu0 %v647
        %678 = vmatprep.subr.mxu0 0.0
        %679 = vmatpush1.msra.mxu0 %v648
        %680 = vmatprep.subr.mxu0 0.0
        %681 = vmatpush1.msra.mxu0 %v649
        %682 = vmatprep.subr.mxu0 0.0
        %683 = vmatpush1.msra.mxu0 %v650
        %684 = vmatprep.subr.mxu0 0.0
        %685 = vmatpush1.msra.mxu0 %v651
        %686 = vmatprep.subr.mxu0 0.0
        %687 = vmatpush1.msra.mxu0 %v652
        %688 = vmatprep.subr.mxu0 0.0
        %689 = vmatpush1.msra.mxu0 %v653
        %690 = vmatprep.subr.mxu0 0.0
        %691 = vmatpush1.msra.mxu0 %v654
        %692 = vmatprep.subr.mxu0 0.0
        %693 = vmatpush1.msra.mxu0 %v655
        %694 = vmatprep.subr.mxu0 0.0
        %695 = vmatpush1.msra.mxu0 %v656
        %696 = vmatprep.subr.mxu0 0.0
        %697 = vmatpush1.msra.mxu0 0.0
        %698 = vmatprep.subr.mxu0 0.0
        %699 = vmatpush1.msra.mxu0 0.0
        %700 = vmatprep.subr.mxu0 0.0
        %701 = vmatpush1.msra.mxu0 0.0
        %702 = vmatprep.subr.mxu0 0.0
        %703 = vmatpush1.msra.mxu0 0.0
        %704 = vmatprep.subr.mxu0 0.0
        %705 = vmatpush1.msra.mxu0 0.0
        %706 = vmatprep.subr.mxu0 0.0
        %707 = vmatpush1.msra.mxu0 0.0
        %708 = vmatprep.subr.mxu0 0.0
        %709 = vmatpush1.msra.mxu0 0.0
        %710 = vmatprep.subr.mxu0 0.0
        %711 = vmatpush1.msra.mxu0 0.0
        %712 = vmatprep.subr.mxu0 0.0
        %713 = vmatpush1.msra.mxu0 0.0
        %714 = vmatprep.subr.mxu0 0.0
        %715 = vmatpush1.msra.mxu0 0.0
        %716 = vmatprep.subr.mxu0 0.0
        %717 = vmatpush1.msra.mxu0 0.0
        %718 = vmatprep.subr.mxu0 0.0
        %719 = vmatpush1.msra.mxu0 0.0
        %720 = vmatprep.subr.mxu0 0.0
        %721 = vmatpush1.msra.mxu0 0.0
        %722 = vmatprep.subr.mxu0 0.0
        %723 = vmatpush1.msra.mxu0 0.0
        %724 = vmatprep.subr.mxu0 0.0
        %725 = vmatpush1.msra.mxu0 0.0
        %726 = vmatprep.subr.mxu0 0.0
        %727 = vmatpush1.msra.mxu0 0.0
        %728 = vmatprep.mubr.f32.mxu0 0.0
        %729 = vmatmul.mubr.f32.gmra.mrb[0].mxu0 %v640
        %v730 = vpop.f32.mrb[0].mxu0
        %v731 = vadd.f32 %v662, %v730
        %v732 = vpop.f32.mrb[0].mxu0
        %733 = vdwg.mxu0
        %v734 = vmax.f32 %v731, 0.0
        %v735 = vadd.f32 %v296, %v734
        %736 = vadd.xlane.f32.xlu0 %v735
        %v737 = vpop.xlane.xlu0 %736
        %v738 = vmul.f32 %v737, 0.03125
        %v739 = vmul.f32 %v735, %v735
        %740 = vadd.xlane.f32.xlu0 %v739
        %v741 = vpop.xlane.xlu0 %740
        %v742 = vmul.f32 %v741, 0.03125
        %v743 = vmul.f32 %v738, %v738
        %v744 = vsub.f32 %v742, %v743
        %v745 = vmax.f32 %v744, 0.0
        %v746 = vadd.f32 %v745, 1e-05
        %v747 = vrsqrt.pop %v746
        %v748 = vsub.f32 %v735, %v738
        %v749 = vmul.f32 %v748, %v747
        %v750 = vld [vmem:[%s4] sm:$0x1]
        %v752 = vlaneseq
        %v753 = vshrl.u32 %v752, 7
        %v754 = vsub.s32 0, %v753
        %v755 = vrot.slane %v750, %v754
        %v757 = vmul.f32 %v749, %v755
        %v758 = vld [vmem:[%s5] sm:$0x1]
        %v760 = vlaneseq
        %v761 = vshrl.u32 %v760, 7
        %v762 = vsub.s32 0, %v761
        %v763 = vrot.slane %v758, %v762
        %v765 = vadd.f32 %v757, %v763
        %766 = vst [vmem:[%s295] sm:$0xff] %v765
        %s767 = sand.u32 %s163, 1
        %s768 = scalar_lea.sflag [#allocation4], %s767
        %s769 = sand.u32 %s163, 1
        %s770 = smul.addr %s769, 8
        %s771 = scalar_lea.vmem [#allocation8], %s770
        // Predicated region
        $region57: #{tpu_custom_call.1} parent=43 // pred_check
          %p772 = pneg %p173
        $region58: #{tpu_custom_call.1} parent=43 // pred_check_branch
          %774 = sbr.rel (%p772) target = $region60
        $region59: #{tpu_custom_call.1} parent=43 // pred_region
          %s776 = ssub.s32 128, 128
          %777 = vsyncadd %s768, %s776
          %s778 = smul.addr %s24, 128
          %s779 = scalar_lea.hbm %s6, %s778
          %s781 = sshll.u32 %s771, 4
          %s782 = int_to_ptr.vmem [resolvable:$true] %s781
          %784 = dma.vmem_to_hbm [thread:$0]  %s782, 128, %s779, %s768
        $region60: #{tpu_custom_call.1} parent=43 // pred_fallthru
          _
      $region44: #{tpu_custom_call.1} parent=5 // pred_fallthru
        _
      %p785 = scmp.le.s32.totalorder 2, %s19
      // Predicated region
      $region61: #{tpu_custom_call.1} parent=5 // pred_check
        %p786 = pneg %p785
      $region62: #{tpu_custom_call.1} parent=5 // pred_check_branch
        %788 = sbr.rel (%p786) target = $region64
      $region63: #{tpu_custom_call.1} parent=5 // pred_region
        %s789 = ssub.s32 %s19, 2
        // Predicated region
        $region65: #{tpu_custom_call.1} parent=63 // pred_check
          %p790 = pneg %p179
        $region66: #{tpu_custom_call.1} parent=63 // pred_check_branch
          %792 = sbr.rel (%p790) target = $region68
        $region67: #{tpu_custom_call.1} parent=63 // pred_region
          %s793 = sand.u32 %s164, 1
          %s794 = scalar_lea.sflag [#allocation4], %s793
          %s795 = sand.u32 %s164, 1
          %s796 = smul.addr %s795, 8
          %s797 = scalar_lea.vmem [#allocation8], %s796
          %798 = dma.done %s794, 128
        $region68: #{tpu_custom_call.1} parent=63 // pred_fallthru
          _
      $region64: #{tpu_custom_call.1} parent=5 // pred_fallthru
        _
    $region6: #{tpu_custom_call.1} parent=1 // loop_footer
      %s23 = sadd.s32 1, %s19
    $region7: #{tpu_custom_call.1} parent=1 // loop_footer_branch
      %18 = sbr.rel target = $region3
    $region8: #{tpu_custom_call.1} parent=1 // loop_exit
      _
    %799 = vsyncpa [#allocation3], 1
    %s800 = scalar_lea.sflag [#allocation3], 1
    %801 = vsyncpa %s800, 1
    %802 = vsyncpa [#allocation6], 1
    %803 = vsyncpa [#allocation4], 1
    %s804 = scalar_lea.sflag [#allocation4], 1
    %805 = vsyncpa %s804, 1

</llo_original>
